<compile_context>
chip_gen: v7x
topology: tpu7x:2x2x1
jax: 0.10.0
libtpu: 0.0.40
codegen_flags: <defaults>
</compile_context>

<pallas_src>
import functools

import jax
import jax.numpy as jnp
from jax.experimental import pallas as pl
from jax.experimental.pallas import tpu as pltpu


def _round_up(x, m):
    return (x + m - 1) // m * m


# -----------------------------------------------------------------------------
# Kernel 1: fused QKV proj + per-segment multi-head attention + out proj.
#   x_ref    : (tn, s, D)  bf16   tn segments of size s
#   wqkv_ref : (D, 3D) bf16, bqkv_ref : (1, 3D) f32
#   wout_ref : (D, D)  bf16, bout_ref : (1, D)  f32
#   o_ref    : (tn*s, D) bf16     token-major output slab (lane axis = D)
#   den_ref  : (tn, s, 1) f32     attn_weights.sum(-1), averaged over heads
# -----------------------------------------------------------------------------
def _seg_attn_kernel(x_ref, wqkv_ref, bqkv_ref, wout_ref, bout_ref,
                     o_ref, den_ref, *, num_heads):
    tn, s, d = x_ref.shape
    hd = d // num_heads
    t = tn * s
    scale = 1.0 / float(hd) ** 0.5

    # QKV projection on the flattened token slab (bf16 MXU, f32 accumulate).
    x = x_ref[...].reshape(t, d)
    qkv = jnp.dot(x, wqkv_ref[...],
                  preferred_element_type=jnp.float32) + bqkv_ref[...]
    qkv = qkv.reshape(tn, s, 3 * d)                           # f32

    # TODO(synk): heads kept as a static unrolled loop over cheap lane slices;
    # a single head-batched contraction would need an in-kernel
    # (tn,s,H,hd)->(tn,H,s,hd) relayout which is not worth it at hd this small
    # (the fused (t,D)x(D,3D)/(D,D) projections carry the MXU work).
    ctx_heads = []
    den_acc = None
    for h in range(num_heads):
        qh = qkv[..., h * hd:(h + 1) * hd]                    # (tn, s, hd)
        kh = qkv[..., d + h * hd:d + (h + 1) * hd]
        vh = qkv[..., 2 * d + h * hd:2 * d + (h + 1) * hd]
        scores = jnp.einsum('nqe,nke->nqk', qh, kh,
                            preferred_element_type=jnp.float32) * scale
        m = jnp.max(scores, axis=-1, keepdims=True)
        e = jnp.exp(scores - m)
        l = jnp.sum(e, axis=-1, keepdims=True)
        inv_l = pl.reciprocal(l, approx=True)                 # EUP slot, ~free
        ctx = jnp.einsum('nqk,nke->nqe', e, vh,
                         preferred_element_type=jnp.float32) * inv_l
        ctx_heads.append(ctx)
        dh = l * inv_l                                        # == sum of probs
        den_acc = dh if den_acc is None else den_acc + dh

    ctx = jnp.concatenate(ctx_heads, axis=-1)                 # (tn, s, D) f32
    out = jnp.dot(ctx.reshape(t, d).astype(jnp.bfloat16), wout_ref[...],
                  preferred_element_type=jnp.float32) + bout_ref[...]
    o_ref[...] = out.astype(o_ref.dtype)
    den_ref[...] = (den_acc * (1.0 / num_heads)).astype(den_ref.dtype)


def segment_attention(x_seg, wqkv, bqkv, wout, bout, *, num_heads,
                      block_tokens=256):
    """Run fused MHA over (n, s, d) segments; returns ((n,s,d) out, (n,s) den)."""
    n, s, d = x_seg.shape
    # Large token tiles for the MXU; pad the segment count up to a multiple of
    # the tile instead of shrinking the tile (padded segments attend over
    # zeros -> finite, and are sliced off below).
    tn = max(8, block_tokens // s)
    tn = min(tn, _round_up(n, 8))
    n_pad = _round_up(n, tn)
    if n_pad != n:
        x_seg = jnp.pad(x_seg, ((0, n_pad - n), (0, 0), (0, 0)))

    # bf16 at the pallas_call boundary for activations and matmul weights;
    # biases stay f32 (added to the f32 accumulator).
    x_bf = x_seg.astype(jnp.bfloat16)
    wqkv_bf = wqkv.astype(jnp.bfloat16)
    wout_bf = wout.astype(jnp.bfloat16)
    bqkv_f = bqkv.astype(jnp.float32)
    bout_f = bout.astype(jnp.float32)

    kernel = functools.partial(_seg_attn_kernel, num_heads=num_heads)
    out, den = pl.pallas_call(
        kernel,
        out_shape=(jax.ShapeDtypeStruct((n_pad * s, d), jnp.bfloat16),
                   jax.ShapeDtypeStruct((n_pad, s, 1), jnp.float32)),
        grid=(n_pad // tn,),
        in_specs=[pl.BlockSpec((tn, s, d), lambda i: (i, 0, 0)),
                  pl.BlockSpec((d, 3 * d), lambda i: (0, 0)),
                  pl.BlockSpec((1, 3 * d), lambda i: (0, 0)),
                  pl.BlockSpec((d, d), lambda i: (0, 0)),
                  pl.BlockSpec((1, d), lambda i: (0, 0))],
        out_specs=(pl.BlockSpec((tn * s, d), lambda i: (i, 0)),
                   pl.BlockSpec((tn, s, 1), lambda i: (i, 0, 0))),
        compiler_params=pltpu.CompilerParams(
            dimension_semantics=("parallel",),
            vmem_limit_bytes=32 * 1024 * 1024),
    )(x_bf, wqkv_bf, bqkv_f, wout_bf, bout_f)
    return out[:n * s].reshape(n, s, d), den[:n, :, 0]


# -----------------------------------------------------------------------------
# Kernel 2: branch softmax over the per-rate denominators + weighted sum of the
# per-rate outputs.  The (K - R) zero branches of the reference formulation are
# folded in analytically instead of materializing zero-filled (B,S,D) buffers.
#   outs_ref : (R, 1, ts, D), dens_ref : (R, 1, ts, 1), o_ref : (1, ts, D)
# -----------------------------------------------------------------------------
def _combine_kernel(outs_ref, dens_ref, o_ref, *, num_zero_branches):
    outs = outs_ref[...].astype(jnp.float32)
    dens = dens_ref[...].astype(jnp.float32)
    m = jnp.maximum(jnp.max(dens, axis=0, keepdims=True), 0.0)
    e = jnp.exp(dens - m)                                     # covered branches
    z = jnp.sum(e, axis=0, keepdims=True) + num_zero_branches * jnp.exp(-m)
    w = e * pl.reciprocal(z, approx=True)
    o_ref[...] = jnp.sum(w * outs, axis=0).astype(o_ref.dtype)


def _pick_seq_tile(s, cap=512):
    if s <= cap:
        return s
    for t in range(cap, 7, -1):
        if s % t == 0 and t % 8 == 0:
            return t
    return s


def combine(outs, dens, num_zero_branches, out_dtype):
    r, b, s, d = outs.shape
    ts = _pick_seq_tile(s)
    kernel = functools.partial(_combine_kernel,
                               num_zero_branches=num_zero_branches)
    return pl.pallas_call(
        kernel,
        out_shape=jax.ShapeDtypeStruct((b, s, d), out_dtype),
        grid=(b, s // ts),
        in_specs=[pl.BlockSpec((r, 1, ts, d), lambda i, j: (0, i, j, 0)),
                  pl.BlockSpec((r, 1, ts, 1), lambda i, j: (0, i, j, 0))],
        out_specs=pl.BlockSpec((1, ts, d), lambda i, j: (i, j, 0)),
        compiler_params=pltpu.CompilerParams(
            dimension_semantics=("parallel", "parallel")),
    )(outs, dens)


# -----------------------------------------------------------------------------
# Glue: per-rate block transpose (collects all offsets of a rate into one batch
# of segments), one fused attention call per rate, then the branch combine.
# -----------------------------------------------------------------------------
def dynamic_dilated_attention(x, params, *, num_rates, num_heads,
                              block_tokens=256):
    b, seq_len, d = x.shape
    outs, dens = [], []
    total_branches = 0
    for ridx in range(num_rates):
        # torch.logspace(0, num_rates-1, num_rates, base=2, dtype=int) == 2**i
        r = 2 ** ridx                       # dilation_rate == segment_size
        total_branches += r
        assert seq_len % (r * r) == 0, "seq_len must be divisible by r*r"
        wqkv, bqkv, wout, bout = params[ridx]
        nblk = seq_len // (r * r)
        # All r offsets of this rate: block of r*r contiguous tokens decomposes
        # as (i = position-in-segment, j = offset); swap to (j, i) so each
        # (b, blk, j) triple is one attention segment over i.
        x_seg = (x.reshape(b, nblk, r, r, d)
                  .transpose(0, 1, 3, 2, 4)
                  .reshape(b * nblk * r, r, d))
        out_seg, den_seg = segment_attention(
            x_seg, wqkv, bqkv, wout, bout,
            num_heads=num_heads, block_tokens=block_tokens)
        # Invert the transpose (instead of a zero-fill scatter back).
        outs.append(out_seg.reshape(b, nblk, r, r, d)
                    .transpose(0, 1, 3, 2, 4)
                    .reshape(b, seq_len, d))
        dens.append(den_seg.reshape(b, nblk, r, r)
                    .transpose(0, 1, 3, 2)
                    .reshape(b, seq_len))
    outs = jnp.stack(outs, axis=0)                  # (R, B, S, D) bf16
    dens = jnp.stack(dens, axis=0)[..., None]       # (R, B, S, 1) f32
    # TODO(synk): reference `zip(weights, all_head_outputs)` iterates weights
    # over the batch dim (a bug); the intended per-branch weighting is done here.
    # TODO(synk): dropout(p=0.0), use_xpos, use_rel_pos_bias, casual are the
    # module defaults (identity / disabled) and are not implemented.
    return combine(outs, dens, total_branches - num_rates, x.dtype)


def init_params(key, d_model, num_rates):
    params = []
    bound = 1.0 / (d_model ** 0.5)
    for _ in range(num_rates):
        k1, k2, k3, k4, key = jax.random.split(key, 5)
        wqkv = jax.random.uniform(k1, (d_model, 3 * d_model), jnp.float32, -bound, bound)
        bqkv = jax.random.uniform(k2, (1, 3 * d_model), jnp.float32, -bound, bound)
        wout = jax.random.uniform(k3, (d_model, d_model), jnp.float32, -bound, bound)
        bout = jax.random.uniform(k4, (1, d_model), jnp.float32, -bound, bound)
        params.append((wqkv, bqkv, wout, bout))
    return params


if __name__ == "__main__":
    d_model, num_heads, num_rates = 32, 4, 3     # rates/segments = [1, 2, 4]
    batch, seq_len = 2, 16

    key = jax.random.PRNGKey(0)
    kx, kp = jax.random.split(key)
    x = jax.random.normal(kx, (batch, seq_len, d_model), jnp.float32)
    params = init_params(kp, d_model, num_rates)

    fn = jax.jit(functools.partial(dynamic_dilated_attention,
                                   num_rates=num_rates, num_heads=num_heads))
    out = fn(x, params)
    jax.block_until_ready(out)
    assert out.shape == (batch, seq_len, d_model)
    assert jnp.all(jnp.isfinite(out))
    print("KERNEL_OK")
</pallas_src>

<mosaic_0001>
module attributes {stable_mosaic.version = 11 : i64} {
  func.func @_seg_attn_kernel(%arg0: i32, %arg1: memref<16x2x32xbf16, #tpu.memory_space<vmem>>, %arg2: memref<32x96xbf16, #tpu.memory_space<vmem>>, %arg3: memref<1x96xf32, #tpu.memory_space<vmem>>, %arg4: memref<32x32xbf16, #tpu.memory_space<vmem>>, %arg5: memref<1x32xf32, #tpu.memory_space<vmem>>, %arg6: memref<32x32xbf16, #tpu.memory_space<vmem>>, %arg7: memref<16x2x1xf32, #tpu.memory_space<vmem>>) attributes {dimension_semantics = [#tpu.dimension_semantics<parallel>], iteration_bounds = array<i64: 1>, scalar_prefetch = 0 : i64, scratch_operands = 0 : i64, tpu.core_type = #tpu.core_type<tc>, window_params = [{transform_indices = @transform_0, window_bounds = array<i64: 16, 2, 32>}, {pipeline_mode = #tpu.pipeline_mode<synchronous>, transform_indices = @transform_1, window_bounds = array<i64: 32, 96>}, {pipeline_mode = #tpu.pipeline_mode<synchronous>, transform_indices = @transform_2, window_bounds = array<i64: 1, 96>}, {pipeline_mode = #tpu.pipeline_mode<synchronous>, transform_indices = @transform_3, window_bounds = array<i64: 32, 32>}, {pipeline_mode = #tpu.pipeline_mode<synchronous>, transform_indices = @transform_4, window_bounds = array<i64: 1, 32>}, {transform_indices = @transform_5, window_bounds = array<i64: 32, 32>}, {transform_indices = @transform_6, window_bounds = array<i64: 16, 2, 1>}]} {
    %c0 = arith.constant 0 : index
    %c0_0 = arith.constant 0 : index
    %c0_1 = arith.constant 0 : index
    %0 = vector.load %arg1[%c0, %c0_0, %c0_1] : memref<16x2x32xbf16, #tpu.memory_space<vmem>>, vector<16x2x32xbf16>
    %1 = vector.shape_cast %0 : vector<16x2x32xbf16> to vector<32x32xbf16>
    %c0_2 = arith.constant 0 : index
    %c0_3 = arith.constant 0 : index
    %2 = vector.load %arg2[%c0_2, %c0_3] : memref<32x96xbf16, #tpu.memory_space<vmem>>, vector<32x96xbf16>
    %cst = arith.constant dense<0.000000e+00> : vector<32x96xf32>
    %3 = tpu.matmul %1, %2, %cst {dimension_numbers = #tpu.dot_dimension_numbers<[1], [0], [0], [1], [0, 0, 1, 1], [], []>} : vector<32x32xbf16>, vector<32x96xbf16>, vector<32x96xf32> -> vector<32x96xf32>
    %c0_4 = arith.constant 0 : index
    %c0_5 = arith.constant 0 : index
    %4 = vector.load %arg3[%c0_4, %c0_5] : memref<1x96xf32, #tpu.memory_space<vmem>>, vector<1x96xf32>
    %5 = vector.broadcast %4 : vector<1x96xf32> to vector<32x96xf32>
    %6 = arith.addf %3, %5 : vector<32x96xf32>
    %7 = vector.shape_cast %6 : vector<32x96xf32> to vector<16x2x96xf32>
    %8 = vector.extract_strided_slice %7 {offsets = [0, 0, 0], sizes = [16, 2, 8], strides = [1, 1, 1]} : vector<16x2x96xf32> to vector<16x2x8xf32>
    %9 = vector.extract_strided_slice %7 {offsets = [0, 0, 32], sizes = [16, 2, 8], strides = [1, 1, 1]} : vector<16x2x96xf32> to vector<16x2x8xf32>
    %10 = vector.extract_strided_slice %7 {offsets = [0, 0, 64], sizes = [16, 2, 8], strides = [1, 1, 1]} : vector<16x2x96xf32> to vector<16x2x8xf32>
    "tpu.trace_start"() <{level = 10 : i32, message = "nqe,nke->nqk"}> : () -> ()
    %cst_6 = arith.constant dense<0.000000e+00> : vector<16x2x2xf32>
    %11 = tpu.matmul %8, %9, %cst_6 {dimension_numbers = #tpu.dot_dimension_numbers<[2], [2], [1], [1], [0, 0, 0, 1, 1, 1], [0], [0]>} : vector<16x2x8xf32>, vector<16x2x8xf32>, vector<16x2x2xf32> -> vector<16x2x2xf32>
    "tpu.trace_stop"() : () -> ()
    %cst_7 = arith.constant 0.353553385 : f32
    %12 = vector.broadcast %cst_7 : f32 to vector<16x2x2xf32>
    %13 = arith.mulf %11, %12 : vector<16x2x2xf32>
    %cst_8 = arith.constant dense<0xFF800000> : vector<16x2xf32>
    %14 = vector.multi_reduction <maximumf>, %13, %cst_8 [2] : vector<16x2x2xf32> to vector<16x2xf32>
    %15 = vector.shape_cast %14 : vector<16x2xf32> to vector<16x2x1xf32>
    %16 = vector.broadcast %15 : vector<16x2x1xf32> to vector<16x2x2xf32>
    %17 = arith.subf %13, %16 : vector<16x2x2xf32>
    %18 = math.exp %17 : vector<16x2x2xf32>
    %cst_9 = arith.constant dense<0.000000e+00> : vector<16x2xf32>
    %19 = vector.multi_reduction <add>, %18, %cst_9 [2] : vector<16x2x2xf32> to vector<16x2xf32>
    %20 = vector.shape_cast %19 : vector<16x2xf32> to vector<16x2x1xf32>
    %21 = tpu.reciprocal %20 {approx = true} : vector<16x2x1xf32> -> vector<16x2x1xf32>
    "tpu.trace_start"() <{level = 10 : i32, message = "nqk,nke->nqe"}> : () -> ()
    %cst_10 = arith.constant dense<0.000000e+00> : vector<16x2x8xf32>
    %22 = tpu.matmul %18, %10, %cst_10 {dimension_numbers = #tpu.dot_dimension_numbers<[2], [1], [1], [2], [0, 0, 0, 1, 1, 2], [0], [0]>} : vector<16x2x2xf32>, vector<16x2x8xf32>, vector<16x2x8xf32> -> vector<16x2x8xf32>
    "tpu.trace_stop"() : () -> ()
    %23 = vector.broadcast %21 : vector<16x2x1xf32> to vector<16x2x8xf32>
    %24 = arith.mulf %22, %23 : vector<16x2x8xf32>
    %25 = arith.mulf %20, %21 : vector<16x2x1xf32>
    %26 = vector.extract_strided_slice %7 {offsets = [0, 0, 8], sizes = [16, 2, 8], strides = [1, 1, 1]} : vector<16x2x96xf32> to vector<16x2x8xf32>
    %27 = vector.extract_strided_slice %7 {offsets = [0, 0, 40], sizes = [16, 2, 8], strides = [1, 1, 1]} : vector<16x2x96xf32> to vector<16x2x8xf32>
    %28 = vector.extract_strided_slice %7 {offsets = [0, 0, 72], sizes = [16, 2, 8], strides = [1, 1, 1]} : vector<16x2x96xf32> to vector<16x2x8xf32>
    "tpu.trace_start"() <{level = 10 : i32, message = "nqe,nke->nqk"}> : () -> ()
    %cst_11 = arith.constant dense<0.000000e+00> : vector<16x2x2xf32>
    %29 = tpu.matmul %26, %27, %cst_11 {dimension_numbers = #tpu.dot_dimension_numbers<[2], [2], [1], [1], [0, 0, 0, 1, 1, 1], [0], [0]>} : vector<16x2x8xf32>, vector<16x2x8xf32>, vector<16x2x2xf32> -> vector<16x2x2xf32>
    "tpu.trace_stop"() : () -> ()
    %cst_12 = arith.constant 0.353553385 : f32
    %30 = vector.broadcast %cst_12 : f32 to vector<16x2x2xf32>
    %31 = arith.mulf %29, %30 : vector<16x2x2xf32>
    %cst_13 = arith.constant dense<0xFF800000> : vector<16x2xf32>
    %32 = vector.multi_reduction <maximumf>, %31, %cst_13 [2] : vector<16x2x2xf32> to vector<16x2xf32>
    %33 = vector.shape_cast %32 : vector<16x2xf32> to vector<16x2x1xf32>
    %34 = vector.broadcast %33 : vector<16x2x1xf32> to vector<16x2x2xf32>
    %35 = arith.subf %31, %34 : vector<16x2x2xf32>
    %36 = math.exp %35 : vector<16x2x2xf32>
    %cst_14 = arith.constant dense<0.000000e+00> : vector<16x2xf32>
    %37 = vector.multi_reduction <add>, %36, %cst_14 [2] : vector<16x2x2xf32> to vector<16x2xf32>
    %38 = vector.shape_cast %37 : vector<16x2xf32> to vector<16x2x1xf32>
    %39 = tpu.reciprocal %38 {approx = true} : vector<16x2x1xf32> -> vector<16x2x1xf32>
    "tpu.trace_start"() <{level = 10 : i32, message = "nqk,nke->nqe"}> : () -> ()
    %cst_15 = arith.constant dense<0.000000e+00> : vector<16x2x8xf32>
    %40 = tpu.matmul %36, %28, %cst_15 {dimension_numbers = #tpu.dot_dimension_numbers<[2], [1], [1], [2], [0, 0, 0, 1, 1, 2], [0], [0]>} : vector<16x2x2xf32>, vector<16x2x8xf32>, vector<16x2x8xf32> -> vector<16x2x8xf32>
    "tpu.trace_stop"() : () -> ()
    %41 = vector.broadcast %39 : vector<16x2x1xf32> to vector<16x2x8xf32>
    %42 = arith.mulf %40, %41 : vector<16x2x8xf32>
    %43 = arith.mulf %38, %39 : vector<16x2x1xf32>
    %44 = arith.addf %25, %43 : vector<16x2x1xf32>
    %45 = vector.extract_strided_slice %7 {offsets = [0, 0, 16], sizes = [16, 2, 8], strides = [1, 1, 1]} : vector<16x2x96xf32> to vector<16x2x8xf32>
    %46 = vector.extract_strided_slice %7 {offsets = [0, 0, 48], sizes = [16, 2, 8], strides = [1, 1, 1]} : vector<16x2x96xf32> to vector<16x2x8xf32>
    %47 = vector.extract_strided_slice %7 {offsets = [0, 0, 80], sizes = [16, 2, 8], strides = [1, 1, 1]} : vector<16x2x96xf32> to vector<16x2x8xf32>
    "tpu.trace_start"() <{level = 10 : i32, message = "nqe,nke->nqk"}> : () -> ()
    %cst_16 = arith.constant dense<0.000000e+00> : vector<16x2x2xf32>
    %48 = tpu.matmul %45, %46, %cst_16 {dimension_numbers = #tpu.dot_dimension_numbers<[2], [2], [1], [1], [0, 0, 0, 1, 1, 1], [0], [0]>} : vector<16x2x8xf32>, vector<16x2x8xf32>, vector<16x2x2xf32> -> vector<16x2x2xf32>
    "tpu.trace_stop"() : () -> ()
    %cst_17 = arith.constant 0.353553385 : f32
    %49 = vector.broadcast %cst_17 : f32 to vector<16x2x2xf32>
    %50 = arith.mulf %48, %49 : vector<16x2x2xf32>
    %cst_18 = arith.constant dense<0xFF800000> : vector<16x2xf32>
    %51 = vector.multi_reduction <maximumf>, %50, %cst_18 [2] : vector<16x2x2xf32> to vector<16x2xf32>
    %52 = vector.shape_cast %51 : vector<16x2xf32> to vector<16x2x1xf32>
    %53 = vector.broadcast %52 : vector<16x2x1xf32> to vector<16x2x2xf32>
    %54 = arith.subf %50, %53 : vector<16x2x2xf32>
    %55 = math.exp %54 : vector<16x2x2xf32>
    %cst_19 = arith.constant dense<0.000000e+00> : vector<16x2xf32>
    %56 = vector.multi_reduction <add>, %55, %cst_19 [2] : vector<16x2x2xf32> to vector<16x2xf32>
    %57 = vector.shape_cast %56 : vector<16x2xf32> to vector<16x2x1xf32>
    %58 = tpu.reciprocal %57 {approx = true} : vector<16x2x1xf32> -> vector<16x2x1xf32>
    "tpu.trace_start"() <{level = 10 : i32, message = "nqk,nke->nqe"}> : () -> ()
    %cst_20 = arith.constant dense<0.000000e+00> : vector<16x2x8xf32>
    %59 = tpu.matmul %55, %47, %cst_20 {dimension_numbers = #tpu.dot_dimension_numbers<[2], [1], [1], [2], [0, 0, 0, 1, 1, 2], [0], [0]>} : vector<16x2x2xf32>, vector<16x2x8xf32>, vector<16x2x8xf32> -> vector<16x2x8xf32>
    "tpu.trace_stop"() : () -> ()
    %60 = vector.broadcast %58 : vector<16x2x1xf32> to vector<16x2x8xf32>
    %61 = arith.mulf %59, %60 : vector<16x2x8xf32>
    %62 = arith.mulf %57, %58 : vector<16x2x1xf32>
    %63 = arith.addf %44, %62 : vector<16x2x1xf32>
    %64 = vector.extract_strided_slice %7 {offsets = [0, 0, 24], sizes = [16, 2, 8], strides = [1, 1, 1]} : vector<16x2x96xf32> to vector<16x2x8xf32>
    %65 = vector.extract_strided_slice %7 {offsets = [0, 0, 56], sizes = [16, 2, 8], strides = [1, 1, 1]} : vector<16x2x96xf32> to vector<16x2x8xf32>
    %66 = vector.extract_strided_slice %7 {offsets = [0, 0, 88], sizes = [16, 2, 8], strides = [1, 1, 1]} : vector<16x2x96xf32> to vector<16x2x8xf32>
    "tpu.trace_start"() <{level = 10 : i32, message = "nqe,nke->nqk"}> : () -> ()
    %cst_21 = arith.constant dense<0.000000e+00> : vector<16x2x2xf32>
    %67 = tpu.matmul %64, %65, %cst_21 {dimension_numbers = #tpu.dot_dimension_numbers<[2], [2], [1], [1], [0, 0, 0, 1, 1, 1], [0], [0]>} : vector<16x2x8xf32>, vector<16x2x8xf32>, vector<16x2x2xf32> -> vector<16x2x2xf32>
    "tpu.trace_stop"() : () -> ()
    %cst_22 = arith.constant 0.353553385 : f32
    %68 = vector.broadcast %cst_22 : f32 to vector<16x2x2xf32>
    %69 = arith.mulf %67, %68 : vector<16x2x2xf32>
    %cst_23 = arith.constant dense<0xFF800000> : vector<16x2xf32>
    %70 = vector.multi_reduction <maximumf>, %69, %cst_23 [2] : vector<16x2x2xf32> to vector<16x2xf32>
    %71 = vector.shape_cast %70 : vector<16x2xf32> to vector<16x2x1xf32>
    %72 = vector.broadcast %71 : vector<16x2x1xf32> to vector<16x2x2xf32>
    %73 = arith.subf %69, %72 : vector<16x2x2xf32>
    %74 = math.exp %73 : vector<16x2x2xf32>
    %cst_24 = arith.constant dense<0.000000e+00> : vector<16x2xf32>
    %75 = vector.multi_reduction <add>, %74, %cst_24 [2] : vector<16x2x2xf32> to vector<16x2xf32>
    %76 = vector.shape_cast %75 : vector<16x2xf32> to vector<16x2x1xf32>
    %77 = tpu.reciprocal %76 {approx = true} : vector<16x2x1xf32> -> vector<16x2x1xf32>
    "tpu.trace_start"() <{level = 10 : i32, message = "nqk,nke->nqe"}> : () -> ()
    %cst_25 = arith.constant dense<0.000000e+00> : vector<16x2x8xf32>
    %78 = tpu.matmul %74, %66, %cst_25 {dimension_numbers = #tpu.dot_dimension_numbers<[2], [1], [1], [2], [0, 0, 0, 1, 1, 2], [0], [0]>} : vector<16x2x2xf32>, vector<16x2x8xf32>, vector<16x2x8xf32> -> vector<16x2x8xf32>
    "tpu.trace_stop"() : () -> ()
    %79 = vector.broadcast %77 : vector<16x2x1xf32> to vector<16x2x8xf32>
    %80 = arith.mulf %78, %79 : vector<16x2x8xf32>
    %81 = arith.mulf %76, %77 : vector<16x2x1xf32>
    %82 = arith.addf %63, %81 : vector<16x2x1xf32>
    %83 = tpu.concatenate %24, %42, %61, %80 in 2 : vector<16x2x8xf32>, vector<16x2x8xf32>, vector<16x2x8xf32>, vector<16x2x8xf32> -> vector<16x2x32xf32>
    %84 = vector.shape_cast %83 : vector<16x2x32xf32> to vector<32x32xf32>
    %85 = arith.truncf %84 : vector<32x32xf32> to vector<32x32xbf16>
    %c0_26 = arith.constant 0 : index
    %c0_27 = arith.constant 0 : index
    %86 = vector.load %arg4[%c0_26, %c0_27] : memref<32x32xbf16, #tpu.memory_space<vmem>>, vector<32x32xbf16>
    %cst_28 = arith.constant dense<0.000000e+00> : vector<32x32xf32>
    %87 = tpu.matmul %85, %86, %cst_28 {dimension_numbers = #tpu.dot_dimension_numbers<[1], [0], [0], [1], [0, 0, 1, 1], [], []>} : vector<32x32xbf16>, vector<32x32xbf16>, vector<32x32xf32> -> vector<32x32xf32>
    %c0_29 = arith.constant 0 : index
    %c0_30 = arith.constant 0 : index
    %88 = vector.load %arg5[%c0_29, %c0_30] : memref<1x32xf32, #tpu.memory_space<vmem>>, vector<1x32xf32>
    %89 = vector.broadcast %88 : vector<1x32xf32> to vector<32x32xf32>
    %90 = arith.addf %87, %89 : vector<32x32xf32>
    %91 = arith.truncf %90 : vector<32x32xf32> to vector<32x32xbf16>
    %c0_31 = arith.constant 0 : index
    %c0_32 = arith.constant 0 : index
    %92 = vector.load %arg6[%c0_31, %c0_32] : memref<32x32xbf16, #tpu.memory_space<vmem>>, vector<32x32xbf16>
    tpu.vector_store %arg6[%c0_31, %c0_32], %91 {strides = array<i32>} : memref<32x32xbf16, #tpu.memory_space<vmem>>, vector<32x32xbf16>,
    %cst_33 = arith.constant 2.500000e-01 : f32
    %93 = vector.broadcast %cst_33 : f32 to vector<16x2x1xf32>
    %94 = arith.mulf %82, %93 : vector<16x2x1xf32>
    %c0_34 = arith.constant 0 : index
    %c0_35 = arith.constant 0 : index
    %c0_36 = arith.constant 0 : index
    %95 = vector.load %arg7[%c0_34, %c0_35, %c0_36] : memref<16x2x1xf32, #tpu.memory_space<vmem>>, vector<16x2x1xf32>
    tpu.vector_store %arg7[%c0_34, %c0_35, %c0_36], %94 {strides = array<i32>} : memref<16x2x1xf32, #tpu.memory_space<vmem>>, vector<16x2x1xf32>,
    return
  }
  func.func @transform_0(%arg0: i32) -> (i32, i32, i32) {
    %c0_i32 = arith.constant 0 : i32
    %c0_i32_0 = arith.constant 0 : i32
    %c0_i32_1 = arith.constant 0 : i32
    return %arg0, %c0_i32, %c0_i32_0 : i32, i32, i32
  }
  func.func @transform_1(%arg0: i32) -> (i32, i32) {
    %c0_i32 = arith.constant 0 : i32
    %c0_i32_0 = arith.constant 0 : i32
    %c0_i32_1 = arith.constant 0 : i32
    return %c0_i32, %c0_i32_0 : i32, i32
  }
  func.func @transform_2(%arg0: i32) -> (i32, i32) {
    %c0_i32 = arith.constant 0 : i32
    %c0_i32_0 = arith.constant 0 : i32
    %c0_i32_1 = arith.constant 0 : i32
    return %c0_i32, %c0_i32_0 : i32, i32
  }
  func.func @transform_3(%arg0: i32) -> (i32, i32) {
    %c0_i32 = arith.constant 0 : i32
    %c0_i32_0 = arith.constant 0 : i32
    %c0_i32_1 = arith.constant 0 : i32
    return %c0_i32, %c0_i32_0 : i32, i32
  }
  func.func @transform_4(%arg0: i32) -> (i32, i32) {
    %c0_i32 = arith.constant 0 : i32
    %c0_i32_0 = arith.constant 0 : i32
    %c0_i32_1 = arith.constant 0 : i32
    return %c0_i32, %c0_i32_0 : i32, i32
  }
  func.func @transform_5(%arg0: i32) -> (i32, i32) {
    %c0_i32 = arith.constant 0 : i32
    %c0_i32_0 = arith.constant 0 : i32
    return %arg0, %c0_i32 : i32, i32
  }
  func.func @transform_6(%arg0: i32) -> (i32, i32, i32) {
    %c0_i32 = arith.constant 0 : i32
    %c0_i32_0 = arith.constant 0 : i32
    %c0_i32_1 = arith.constant 0 : i32
    return %arg0, %c0_i32, %c0_i32_0 : i32, i32, i32
  }
}

module attributes {stable_mosaic.version = 11 : i64} {
  func.func @_seg_attn_kernel(%arg0: i32, %arg1: memref<8x4x32xbf16, #tpu.memory_space<vmem>>, %arg2: memref<32x96xbf16, #tpu.memory_space<vmem>>, %arg3: memref<1x96xf32, #tpu.memory_space<vmem>>, %arg4: memref<32x32xbf16, #tpu.memory_space<vmem>>, %arg5: memref<1x32xf32, #tpu.memory_space<vmem>>, %arg6: memref<32x32xbf16, #tpu.memory_space<vmem>>, %arg7: memref<8x4x1xf32, #tpu.memory_space<vmem>>) attributes {dimension_semantics = [#tpu.dimension_semantics<parallel>], iteration_bounds = array<i64: 1>, scalar_prefetch = 0 : i64, scratch_operands = 0 : i64, tpu.core_type = #tpu.core_type<tc>, window_params = [{transform_indices = @transform_0, window_bounds = array<i64: 8, 4, 32>}, {pipeline_mode = #tpu.pipeline_mode<synchronous>, transform_indices = @transform_1, window_bounds = array<i64: 32, 96>}, {pipeline_mode = #tpu.pipeline_mode<synchronous>, transform_indices = @transform_2, window_bounds = array<i64: 1, 96>}, {pipeline_mode = #tpu.pipeline_mode<synchronous>, transform_indices = @transform_3, window_bounds = array<i64: 32, 32>}, {pipeline_mode = #tpu.pipeline_mode<synchronous>, transform_indices = @transform_4, window_bounds = array<i64: 1, 32>}, {transform_indices = @transform_5, window_bounds = array<i64: 32, 32>}, {transform_indices = @transform_6, window_bounds = array<i64: 8, 4, 1>}]} {
    %c0 = arith.constant 0 : index
    %c0_0 = arith.constant 0 : index
    %c0_1 = arith.constant 0 : index
    %0 = vector.load %arg1[%c0, %c0_0, %c0_1] : memref<8x4x32xbf16, #tpu.memory_space<vmem>>, vector<8x4x32xbf16>
    %1 = vector.shape_cast %0 : vector<8x4x32xbf16> to vector<32x32xbf16>
    %c0_2 = arith.constant 0 : index
    %c0_3 = arith.constant 0 : index
    %2 = vector.load %arg2[%c0_2, %c0_3] : memref<32x96xbf16, #tpu.memory_space<vmem>>, vector<32x96xbf16>
    %cst = arith.constant dense<0.000000e+00> : vector<32x96xf32>
    %3 = tpu.matmul %1, %2, %cst {dimension_numbers = #tpu.dot_dimension_numbers<[1], [0], [0], [1], [0, 0, 1, 1], [], []>} : vector<32x32xbf16>, vector<32x96xbf16>, vector<32x96xf32> -> vector<32x96xf32>
    %c0_4 = arith.constant 0 : index
    %c0_5 = arith.constant 0 : index
    %4 = vector.load %arg3[%c0_4, %c0_5] : memref<1x96xf32, #tpu.memory_space<vmem>>, vector<1x96xf32>
    %5 = vector.broadcast %4 : vector<1x96xf32> to vector<32x96xf32>
    %6 = arith.addf %3, %5 : vector<32x96xf32>
    %7 = vector.shape_cast %6 : vector<32x96xf32> to vector<8x4x96xf32>
    %8 = vector.extract_strided_slice %7 {offsets = [0, 0, 0], sizes = [8, 4, 8], strides = [1, 1, 1]} : vector<8x4x96xf32> to vector<8x4x8xf32>
    %9 = vector.extract_strided_slice %7 {offsets = [0, 0, 32], sizes = [8, 4, 8], strides = [1, 1, 1]} : vector<8x4x96xf32> to vector<8x4x8xf32>
    %10 = vector.extract_strided_slice %7 {offsets = [0, 0, 64], sizes = [8, 4, 8], strides = [1, 1, 1]} : vector<8x4x96xf32> to vector<8x4x8xf32>
    "tpu.trace_start"() <{level = 10 : i32, message = "nqe,nke->nqk"}> : () -> ()
    %cst_6 = arith.constant dense<0.000000e+00> : vector<8x4x4xf32>
    %11 = tpu.matmul %8, %9, %cst_6 {dimension_numbers = #tpu.dot_dimension_numbers<[2], [2], [1], [1], [0, 0, 0, 1, 1, 1], [0], [0]>} : vector<8x4x8xf32>, vector<8x4x8xf32>, vector<8x4x4xf32> -> vector<8x4x4xf32>
    "tpu.trace_stop"() : () -> ()
    %cst_7 = arith.constant 0.353553385 : f32
    %12 = vector.broadcast %cst_7 : f32 to vector<8x4x4xf32>
    %13 = arith.mulf %11, %12 : vector<8x4x4xf32>
    %cst_8 = arith.constant dense<0xFF800000> : vector<8x4xf32>
    %14 = vector.multi_reduction <maximumf>, %13, %cst_8 [2] : vector<8x4x4xf32> to vector<8x4xf32>
    %15 = vector.shape_cast %14 : vector<8x4xf32> to vector<8x4x1xf32>
    %16 = vector.broadcast %15 : vector<8x4x1xf32> to vector<8x4x4xf32>
    %17 = arith.subf %13, %16 : vector<8x4x4xf32>
    %18 = math.exp %17 : vector<8x4x4xf32>
    %cst_9 = arith.constant dense<0.000000e+00> : vector<8x4xf32>
    %19 = vector.multi_reduction <add>, %18, %cst_9 [2] : vector<8x4x4xf32> to vector<8x4xf32>
    %20 = vector.shape_cast %19 : vector<8x4xf32> to vector<8x4x1xf32>
    %21 = tpu.reciprocal %20 {approx = true} : vector<8x4x1xf32> -> vector<8x4x1xf32>
    "tpu.trace_start"() <{level = 10 : i32, message = "nqk,nke->nqe"}> : () -> ()
    %cst_10 = arith.constant dense<0.000000e+00> : vector<8x4x8xf32>
    %22 = tpu.matmul %18, %10, %cst_10 {dimension_numbers = #tpu.dot_dimension_numbers<[2], [1], [1], [2], [0, 0, 0, 1, 1, 2], [0], [0]>} : vector<8x4x4xf32>, vector<8x4x8xf32>, vector<8x4x8xf32> -> vector<8x4x8xf32>
    "tpu.trace_stop"() : () -> ()
    %23 = vector.broadcast %21 : vector<8x4x1xf32> to vector<8x4x8xf32>
    %24 = arith.mulf %22, %23 : vector<8x4x8xf32>
    %25 = arith.mulf %20, %21 : vector<8x4x1xf32>
    %26 = vector.extract_strided_slice %7 {offsets = [0, 0, 8], sizes = [8, 4, 8], strides = [1, 1, 1]} : vector<8x4x96xf32> to vector<8x4x8xf32>
    %27 = vector.extract_strided_slice %7 {offsets = [0, 0, 40], sizes = [8, 4, 8], strides = [1, 1, 1]} : vector<8x4x96xf32> to vector<8x4x8xf32>
    %28 = vector.extract_strided_slice %7 {offsets = [0, 0, 72], sizes = [8, 4, 8], strides = [1, 1, 1]} : vector<8x4x96xf32> to vector<8x4x8xf32>
    "tpu.trace_start"() <{level = 10 : i32, message = "nqe,nke->nqk"}> : () -> ()
    %cst_11 = arith.constant dense<0.000000e+00> : vector<8x4x4xf32>
    %29 = tpu.matmul %26, %27, %cst_11 {dimension_numbers = #tpu.dot_dimension_numbers<[2], [2], [1], [1], [0, 0, 0, 1, 1, 1], [0], [0]>} : vector<8x4x8xf32>, vector<8x4x8xf32>, vector<8x4x4xf32> -> vector<8x4x4xf32>
    "tpu.trace_stop"() : () -> ()
    %cst_12 = arith.constant 0.353553385 : f32
    %30 = vector.broadcast %cst_12 : f32 to vector<8x4x4xf32>
    %31 = arith.mulf %29, %30 : vector<8x4x4xf32>
    %cst_13 = arith.constant dense<0xFF800000> : vector<8x4xf32>
    %32 = vector.multi_reduction <maximumf>, %31, %cst_13 [2] : vector<8x4x4xf32> to vector<8x4xf32>
    %33 = vector.shape_cast %32 : vector<8x4xf32> to vector<8x4x1xf32>
    %34 = vector.broadcast %33 : vector<8x4x1xf32> to vector<8x4x4xf32>
    %35 = arith.subf %31, %34 : vector<8x4x4xf32>
    %36 = math.exp %35 : vector<8x4x4xf32>
    %cst_14 = arith.constant dense<0.000000e+00> : vector<8x4xf32>
    %37 = vector.multi_reduction <add>, %36, %cst_14 [2] : vector<8x4x4xf32> to vector<8x4xf32>
    %38 = vector.shape_cast %37 : vector<8x4xf32> to vector<8x4x1xf32>
    %39 = tpu.reciprocal %38 {approx = true} : vector<8x4x1xf32> -> vector<8x4x1xf32>
    "tpu.trace_start"() <{level = 10 : i32, message = "nqk,nke->nqe"}> : () -> ()
    %cst_15 = arith.constant dense<0.000000e+00> : vector<8x4x8xf32>
    %40 = tpu.matmul %36, %28, %cst_15 {dimension_numbers = #tpu.dot_dimension_numbers<[2], [1], [1], [2], [0, 0, 0, 1, 1, 2], [0], [0]>} : vector<8x4x4xf32>, vector<8x4x8xf32>, vector<8x4x8xf32> -> vector<8x4x8xf32>
    "tpu.trace_stop"() : () -> ()
    %41 = vector.broadcast %39 : vector<8x4x1xf32> to vector<8x4x8xf32>
    %42 = arith.mulf %40, %41 : vector<8x4x8xf32>
    %43 = arith.mulf %38, %39 : vector<8x4x1xf32>
    %44 = arith.addf %25, %43 : vector<8x4x1xf32>
    %45 = vector.extract_strided_slice %7 {offsets = [0, 0, 16], sizes = [8, 4, 8], strides = [1, 1, 1]} : vector<8x4x96xf32> to vector<8x4x8xf32>
    %46 = vector.extract_strided_slice %7 {offsets = [0, 0, 48], sizes = [8, 4, 8], strides = [1, 1, 1]} : vector<8x4x96xf32> to vector<8x4x8xf32>
    %47 = vector.extract_strided_slice %7 {offsets = [0, 0, 80], sizes = [8, 4, 8], strides = [1, 1, 1]} : vector<8x4x96xf32> to vector<8x4x8xf32>
    "tpu.trace_start"() <{level = 10 : i32, message = "nqe,nke->nqk"}> : () -> ()
    %cst_16 = arith.constant dense<0.000000e+00> : vector<8x4x4xf32>
    %48 = tpu.matmul %45, %46, %cst_16 {dimension_numbers = #tpu.dot_dimension_numbers<[2], [2], [1], [1], [0, 0, 0, 1, 1, 1], [0], [0]>} : vector<8x4x8xf32>, vector<8x4x8xf32>, vector<8x4x4xf32> -> vector<8x4x4xf32>
    "tpu.trace_stop"() : () -> ()
    %cst_17 = arith.constant 0.353553385 : f32
    %49 = vector.broadcast %cst_17 : f32 to vector<8x4x4xf32>
    %50 = arith.mulf %48, %49 : vector<8x4x4xf32>
    %cst_18 = arith.constant dense<0xFF800000> : vector<8x4xf32>
    %51 = vector.multi_reduction <maximumf>, %50, %cst_18 [2] : vector<8x4x4xf32> to vector<8x4xf32>
    %52 = vector.shape_cast %51 : vector<8x4xf32> to vector<8x4x1xf32>
    %53 = vector.broadcast %52 : vector<8x4x1xf32> to vector<8x4x4xf32>
    %54 = arith.subf %50, %53 : vector<8x4x4xf32>
    %55 = math.exp %54 : vector<8x4x4xf32>
    %cst_19 = arith.constant dense<0.000000e+00> : vector<8x4xf32>
    %56 = vector.multi_reduction <add>, %55, %cst_19 [2] : vector<8x4x4xf32> to vector<8x4xf32>
    %57 = vector.shape_cast %56 : vector<8x4xf32> to vector<8x4x1xf32>
    %58 = tpu.reciprocal %57 {approx = true} : vector<8x4x1xf32> -> vector<8x4x1xf32>
    "tpu.trace_start"() <{level = 10 : i32, message = "nqk,nke->nqe"}> : () -> ()
    %cst_20 = arith.constant dense<0.000000e+00> : vector<8x4x8xf32>
    %59 = tpu.matmul %55, %47, %cst_20 {dimension_numbers = #tpu.dot_dimension_numbers<[2], [1], [1], [2], [0, 0, 0, 1, 1, 2], [0], [0]>} : vector<8x4x4xf32>, vector<8x4x8xf32>, vector<8x4x8xf32> -> vector<8x4x8xf32>
    "tpu.trace_stop"() : () -> ()
    %60 = vector.broadcast %58 : vector<8x4x1xf32> to vector<8x4x8xf32>
    %61 = arith.mulf %59, %60 : vector<8x4x8xf32>
    %62 = arith.mulf %57, %58 : vector<8x4x1xf32>
    %63 = arith.addf %44, %62 : vector<8x4x1xf32>
    %64 = vector.extract_strided_slice %7 {offsets = [0, 0, 24], sizes = [8, 4, 8], strides = [1, 1, 1]} : vector<8x4x96xf32> to vector<8x4x8xf32>
    %65 = vector.extract_strided_slice %7 {offsets = [0, 0, 56], sizes = [8, 4, 8], strides = [1, 1, 1]} : vector<8x4x96xf32> to vector<8x4x8xf32>
    %66 = vector.extract_strided_slice %7 {offsets = [0, 0, 88], sizes = [8, 4, 8], strides = [1, 1, 1]} : vector<8x4x96xf32> to vector<8x4x8xf32>
    "tpu.trace_start"() <{level = 10 : i32, message = "nqe,nke->nqk"}> : () -> ()
    %cst_21 = arith.constant dense<0.000000e+00> : vector<8x4x4xf32>
    %67 = tpu.matmul %64, %65, %cst_21 {dimension_numbers = #tpu.dot_dimension_numbers<[2], [2], [1], [1], [0, 0, 0, 1, 1, 1], [0], [0]>} : vector<8x4x8xf32>, vector<8x4x8xf32>, vector<8x4x4xf32> -> vector<8x4x4xf32>
    "tpu.trace_stop"() : () -> ()
    %cst_22 = arith.constant 0.353553385 : f32
    %68 = vector.broadcast %cst_22 : f32 to vector<8x4x4xf32>
    %69 = arith.mulf %67, %68 : vector<8x4x4xf32>
    %cst_23 = arith.constant dense<0xFF800000> : vector<8x4xf32>
    %70 = vector.multi_reduction <maximumf>, %69, %cst_23 [2] : vector<8x4x4xf32> to vector<8x4xf32>
    %71 = vector.shape_cast %70 : vector<8x4xf32> to vector<8x4x1xf32>
    %72 = vector.broadcast %71 : vector<8x4x1xf32> to vector<8x4x4xf32>
    %73 = arith.subf %69, %72 : vector<8x4x4xf32>
    %74 = math.exp %73 : vector<8x4x4xf32>
    %cst_24 = arith.constant dense<0.000000e+00> : vector<8x4xf32>
    %75 = vector.multi_reduction <add>, %74, %cst_24 [2] : vector<8x4x4xf32> to vector<8x4xf32>
    %76 = vector.shape_cast %75 : vector<8x4xf32> to vector<8x4x1xf32>
    %77 = tpu.reciprocal %76 {approx = true} : vector<8x4x1xf32> -> vector<8x4x1xf32>
    "tpu.trace_start"() <{level = 10 : i32, message = "nqk,nke->nqe"}> : () -> ()
    %cst_25 = arith.constant dense<0.000000e+00> : vector<8x4x8xf32>
    %78 = tpu.matmul %74, %66, %cst_25 {dimension_numbers = #tpu.dot_dimension_numbers<[2], [1], [1], [2], [0, 0, 0, 1, 1, 2], [0], [0]>} : vector<8x4x4xf32>, vector<8x4x8xf32>, vector<8x4x8xf32> -> vector<8x4x8xf32>
    "tpu.trace_stop"() : () -> ()
    %79 = vector.broadcast %77 : vector<8x4x1xf32> to vector<8x4x8xf32>
    %80 = arith.mulf %78, %79 : vector<8x4x8xf32>
    %81 = arith.mulf %76, %77 : vector<8x4x1xf32>
    %82 = arith.addf %63, %81 : vector<8x4x1xf32>
    %83 = tpu.concatenate %24, %42, %61, %80 in 2 : vector<8x4x8xf32>, vector<8x4x8xf32>, vector<8x4x8xf32>, vector<8x4x8xf32> -> vector<8x4x32xf32>
    %84 = vector.shape_cast %83 : vector<8x4x32xf32> to vector<32x32xf32>
    %85 = arith.truncf %84 : vector<32x32xf32> to vector<32x32xbf16>
    %c0_26 = arith.constant 0 : index
    %c0_27 = arith.constant 0 : index
    %86 = vector.load %arg4[%c0_26, %c0_27] : memref<32x32xbf16, #tpu.memory_space<vmem>>, vector<32x32xbf16>
    %cst_28 = arith.constant dense<0.000000e+00> : vector<32x32xf32>
    %87 = tpu.matmul %85, %86, %cst_28 {dimension_numbers = #tpu.dot_dimension_numbers<[1], [0], [0], [1], [0, 0, 1, 1], [], []>} : vector<32x32xbf16>, vector<32x32xbf16>, vector<32x32xf32> -> vector<32x32xf32>
    %c0_29 = arith.constant 0 : index
    %c0_30 = arith.constant 0 : index
    %88 = vector.load %arg5[%c0_29, %c0_30] : memref<1x32xf32, #tpu.memory_space<vmem>>, vector<1x32xf32>
    %89 = vector.broadcast %88 : vector<1x32xf32> to vector<32x32xf32>
    %90 = arith.addf %87, %89 : vector<32x32xf32>
    %91 = arith.truncf %90 : vector<32x32xf32> to vector<32x32xbf16>
    %c0_31 = arith.constant 0 : index
    %c0_32 = arith.constant 0 : index
    %92 = vector.load %arg6[%c0_31, %c0_32] : memref<32x32xbf16, #tpu.memory_space<vmem>>, vector<32x32xbf16>
    tpu.vector_store %arg6[%c0_31, %c0_32], %91 {strides = array<i32>} : memref<32x32xbf16, #tpu.memory_space<vmem>>, vector<32x32xbf16>,
    %cst_33 = arith.constant 2.500000e-01 : f32
    %93 = vector.broadcast %cst_33 : f32 to vector<8x4x1xf32>
    %94 = arith.mulf %82, %93 : vector<8x4x1xf32>
    %c0_34 = arith.constant 0 : index
    %c0_35 = arith.constant 0 : index
    %c0_36 = arith.constant 0 : index
    %95 = vector.load %arg7[%c0_34, %c0_35, %c0_36] : memref<8x4x1xf32, #tpu.memory_space<vmem>>, vector<8x4x1xf32>
    tpu.vector_store %arg7[%c0_34, %c0_35, %c0_36], %94 {strides = array<i32>} : memref<8x4x1xf32, #tpu.memory_space<vmem>>, vector<8x4x1xf32>,
    return
  }
  func.func @transform_0(%arg0: i32) -> (i32, i32, i32) {
    %c0_i32 = arith.constant 0 : i32
    %c0_i32_0 = arith.constant 0 : i32
    %c0_i32_1 = arith.constant 0 : i32
    return %arg0, %c0_i32, %c0_i32_0 : i32, i32, i32
  }
  func.func @transform_1(%arg0: i32) -> (i32, i32) {
    %c0_i32 = arith.constant 0 : i32
    %c0_i32_0 = arith.constant 0 : i32
    %c0_i32_1 = arith.constant 0 : i32
    return %c0_i32, %c0_i32_0 : i32, i32
  }
  func.func @transform_2(%arg0: i32) -> (i32, i32) {
    %c0_i32 = arith.constant 0 : i32
    %c0_i32_0 = arith.constant 0 : i32
    %c0_i32_1 = arith.constant 0 : i32
    return %c0_i32, %c0_i32_0 : i32, i32
  }
  func.func @transform_3(%arg0: i32) -> (i32, i32) {
    %c0_i32 = arith.constant 0 : i32
    %c0_i32_0 = arith.constant 0 : i32
    %c0_i32_1 = arith.constant 0 : i32
    return %c0_i32, %c0_i32_0 : i32, i32
  }
  func.func @transform_4(%arg0: i32) -> (i32, i32) {
    %c0_i32 = arith.constant 0 : i32
    %c0_i32_0 = arith.constant 0 : i32
    %c0_i32_1 = arith.constant 0 : i32
    return %c0_i32, %c0_i32_0 : i32, i32
  }
  func.func @transform_5(%arg0: i32) -> (i32, i32) {
    %c0_i32 = arith.constant 0 : i32
    %c0_i32_0 = arith.constant 0 : i32
    return %arg0, %c0_i32 : i32, i32
  }
  func.func @transform_6(%arg0: i32) -> (i32, i32, i32) {
    %c0_i32 = arith.constant 0 : i32
    %c0_i32_0 = arith.constant 0 : i32
    %c0_i32_1 = arith.constant 0 : i32
    return %arg0, %c0_i32, %c0_i32_0 : i32, i32, i32
  }
}

module attributes {stable_mosaic.version = 11 : i64} {
  func.func @_seg_attn_kernel(%arg0: i32, %arg1: memref<32x1x32xbf16, #tpu.memory_space<vmem>>, %arg2: memref<32x96xbf16, #tpu.memory_space<vmem>>, %arg3: memref<1x96xf32, #tpu.memory_space<vmem>>, %arg4: memref<32x32xbf16, #tpu.memory_space<vmem>>, %arg5: memref<1x32xf32, #tpu.memory_space<vmem>>, %arg6: memref<32x32xbf16, #tpu.memory_space<vmem>>, %arg7: memref<32x1x1xf32, #tpu.memory_space<vmem>>) attributes {dimension_semantics = [#tpu.dimension_semantics<parallel>], iteration_bounds = array<i64: 1>, scalar_prefetch = 0 : i64, scratch_operands = 0 : i64, tpu.core_type = #tpu.core_type<tc>, window_params = [{transform_indices = @transform_0, window_bounds = array<i64: 32, 1, 32>}, {pipeline_mode = #tpu.pipeline_mode<synchronous>, transform_indices = @transform_1, window_bounds = array<i64: 32, 96>}, {pipeline_mode = #tpu.pipeline_mode<synchronous>, transform_indices = @transform_2, window_bounds = array<i64: 1, 96>}, {pipeline_mode = #tpu.pipeline_mode<synchronous>, transform_indices = @transform_3, window_bounds = array<i64: 32, 32>}, {pipeline_mode = #tpu.pipeline_mode<synchronous>, transform_indices = @transform_4, window_bounds = array<i64: 1, 32>}, {transform_indices = @transform_5, window_bounds = array<i64: 32, 32>}, {transform_indices = @transform_6, window_bounds = array<i64: 32, 1, 1>}]} {
    %c0 = arith.constant 0 : index
    %c0_0 = arith.constant 0 : index
    %c0_1 = arith.constant 0 : index
    %0 = vector.load %arg1[%c0, %c0_0, %c0_1] : memref<32x1x32xbf16, #tpu.memory_space<vmem>>, vector<32x1x32xbf16>
    %1 = vector.shape_cast %0 : vector<32x1x32xbf16> to vector<32x32xbf16>
    %c0_2 = arith.constant 0 : index
    %c0_3 = arith.constant 0 : index
    %2 = vector.load %arg2[%c0_2, %c0_3] : memref<32x96xbf16, #tpu.memory_space<vmem>>, vector<32x96xbf16>
    %cst = arith.constant dense<0.000000e+00> : vector<32x96xf32>
    %3 = tpu.matmul %1, %2, %cst {dimension_numbers = #tpu.dot_dimension_numbers<[1], [0], [0], [1], [0, 0, 1, 1], [], []>} : vector<32x32xbf16>, vector<32x96xbf16>, vector<32x96xf32> -> vector<32x96xf32>
    %c0_4 = arith.constant 0 : index
    %c0_5 = arith.constant 0 : index
    %4 = vector.load %arg3[%c0_4, %c0_5] : memref<1x96xf32, #tpu.memory_space<vmem>>, vector<1x96xf32>
    %5 = vector.broadcast %4 : vector<1x96xf32> to vector<32x96xf32>
    %6 = arith.addf %3, %5 : vector<32x96xf32>
    %7 = vector.shape_cast %6 : vector<32x96xf32> to vector<32x1x96xf32>
    %8 = vector.extract_strided_slice %7 {offsets = [0, 0, 0], sizes = [32, 1, 8], strides = [1, 1, 1]} : vector<32x1x96xf32> to vector<32x1x8xf32>
    %9 = vector.extract_strided_slice %7 {offsets = [0, 0, 32], sizes = [32, 1, 8], strides = [1, 1, 1]} : vector<32x1x96xf32> to vector<32x1x8xf32>
    %10 = vector.extract_strided_slice %7 {offsets = [0, 0, 64], sizes = [32, 1, 8], strides = [1, 1, 1]} : vector<32x1x96xf32> to vector<32x1x8xf32>
    "tpu.trace_start"() <{level = 10 : i32, message = "nqe,nke->nqk"}> : () -> ()
    %cst_6 = arith.constant dense<0.000000e+00> : vector<32x1x1xf32>
    %11 = tpu.matmul %8, %9, %cst_6 {dimension_numbers = #tpu.dot_dimension_numbers<[2], [2], [1], [1], [0, 0, 0, 1, 1, 1], [0], [0]>} : vector<32x1x8xf32>, vector<32x1x8xf32>, vector<32x1x1xf32> -> vector<32x1x1xf32>
    "tpu.trace_stop"() : () -> ()
    %cst_7 = arith.constant 0.353553385 : f32
    %12 = vector.broadcast %cst_7 : f32 to vector<32x1x1xf32>
    %13 = arith.mulf %11, %12 : vector<32x1x1xf32>
    %cst_8 = arith.constant dense<0xFF800000> : vector<32x1xf32>
    %14 = vector.multi_reduction <maximumf>, %13, %cst_8 [2] : vector<32x1x1xf32> to vector<32x1xf32>
    %15 = vector.shape_cast %14 : vector<32x1xf32> to vector<32x1x1xf32>
    %16 = arith.subf %13, %15 : vector<32x1x1xf32>
    %17 = math.exp %16 : vector<32x1x1xf32>
    %cst_9 = arith.constant dense<0.000000e+00> : vector<32x1xf32>
    %18 = vector.multi_reduction <add>, %17, %cst_9 [2] : vector<32x1x1xf32> to vector<32x1xf32>
    %19 = vector.shape_cast %18 : vector<32x1xf32> to vector<32x1x1xf32>
    %20 = tpu.reciprocal %19 {approx = true} : vector<32x1x1xf32> -> vector<32x1x1xf32>
    "tpu.trace_start"() <{level = 10 : i32, message = "nqk,nke->nqe"}> : () -> ()
    %cst_10 = arith.constant dense<0.000000e+00> : vector<32x1x8xf32>
    %21 = tpu.matmul %17, %10, %cst_10 {dimension_numbers = #tpu.dot_dimension_numbers<[2], [1], [1], [2], [0, 0, 0, 1, 1, 2], [0], [0]>} : vector<32x1x1xf32>, vector<32x1x8xf32>, vector<32x1x8xf32> -> vector<32x1x8xf32>
    "tpu.trace_stop"() : () -> ()
    %22 = vector.broadcast %20 : vector<32x1x1xf32> to vector<32x1x8xf32>
    %23 = arith.mulf %21, %22 : vector<32x1x8xf32>
    %24 = arith.mulf %19, %20 : vector<32x1x1xf32>
    %25 = vector.extract_strided_slice %7 {offsets = [0, 0, 8], sizes = [32, 1, 8], strides = [1, 1, 1]} : vector<32x1x96xf32> to vector<32x1x8xf32>
    %26 = vector.extract_strided_slice %7 {offsets = [0, 0, 40], sizes = [32, 1, 8], strides = [1, 1, 1]} : vector<32x1x96xf32> to vector<32x1x8xf32>
    %27 = vector.extract_strided_slice %7 {offsets = [0, 0, 72], sizes = [32, 1, 8], strides = [1, 1, 1]} : vector<32x1x96xf32> to vector<32x1x8xf32>
    "tpu.trace_start"() <{level = 10 : i32, message = "nqe,nke->nqk"}> : () -> ()
    %cst_11 = arith.constant dense<0.000000e+00> : vector<32x1x1xf32>
    %28 = tpu.matmul %25, %26, %cst_11 {dimension_numbers = #tpu.dot_dimension_numbers<[2], [2], [1], [1], [0, 0, 0, 1, 1, 1], [0], [0]>} : vector<32x1x8xf32>, vector<32x1x8xf32>, vector<32x1x1xf32> -> vector<32x1x1xf32>
    "tpu.trace_stop"() : () -> ()
    %cst_12 = arith.constant 0.353553385 : f32
    %29 = vector.broadcast %cst_12 : f32 to vector<32x1x1xf32>
    %30 = arith.mulf %28, %29 : vector<32x1x1xf32>
    %cst_13 = arith.constant dense<0xFF800000> : vector<32x1xf32>
    %31 = vector.multi_reduction <maximumf>, %30, %cst_13 [2] : vector<32x1x1xf32> to vector<32x1xf32>
    %32 = vector.shape_cast %31 : vector<32x1xf32> to vector<32x1x1xf32>
    %33 = arith.subf %30, %32 : vector<32x1x1xf32>
    %34 = math.exp %33 : vector<32x1x1xf32>
    %cst_14 = arith.constant dense<0.000000e+00> : vector<32x1xf32>
    %35 = vector.multi_reduction <add>, %34, %cst_14 [2] : vector<32x1x1xf32> to vector<32x1xf32>
    %36 = vector.shape_cast %35 : vector<32x1xf32> to vector<32x1x1xf32>
    %37 = tpu.reciprocal %36 {approx = true} : vector<32x1x1xf32> -> vector<32x1x1xf32>
    "tpu.trace_start"() <{level = 10 : i32, message = "nqk,nke->nqe"}> : () -> ()
    %cst_15 = arith.constant dense<0.000000e+00> : vector<32x1x8xf32>
    %38 = tpu.matmul %34, %27, %cst_15 {dimension_numbers = #tpu.dot_dimension_numbers<[2], [1], [1], [2], [0, 0, 0, 1, 1, 2], [0], [0]>} : vector<32x1x1xf32>, vector<32x1x8xf32>, vector<32x1x8xf32> -> vector<32x1x8xf32>
    "tpu.trace_stop"() : () -> ()
    %39 = vector.broadcast %37 : vector<32x1x1xf32> to vector<32x1x8xf32>
    %40 = arith.mulf %38, %39 : vector<32x1x8xf32>
    %41 = arith.mulf %36, %37 : vector<32x1x1xf32>
    %42 = arith.addf %24, %41 : vector<32x1x1xf32>
    %43 = vector.extract_strided_slice %7 {offsets = [0, 0, 16], sizes = [32, 1, 8], strides = [1, 1, 1]} : vector<32x1x96xf32> to vector<32x1x8xf32>
    %44 = vector.extract_strided_slice %7 {offsets = [0, 0, 48], sizes = [32, 1, 8], strides = [1, 1, 1]} : vector<32x1x96xf32> to vector<32x1x8xf32>
    %45 = vector.extract_strided_slice %7 {offsets = [0, 0, 80], sizes = [32, 1, 8], strides = [1, 1, 1]} : vector<32x1x96xf32> to vector<32x1x8xf32>
    "tpu.trace_start"() <{level = 10 : i32, message = "nqe,nke->nqk"}> : () -> ()
    %cst_16 = arith.constant dense<0.000000e+00> : vector<32x1x1xf32>
    %46 = tpu.matmul %43, %44, %cst_16 {dimension_numbers = #tpu.dot_dimension_numbers<[2], [2], [1], [1], [0, 0, 0, 1, 1, 1], [0], [0]>} : vector<32x1x8xf32>, vector<32x1x8xf32>, vector<32x1x1xf32> -> vector<32x1x1xf32>
    "tpu.trace_stop"() : () -> ()
    %cst_17 = arith.constant 0.353553385 : f32
    %47 = vector.broadcast %cst_17 : f32 to vector<32x1x1xf32>
    %48 = arith.mulf %46, %47 : vector<32x1x1xf32>
    %cst_18 = arith.constant dense<0xFF800000> : vector<32x1xf32>
    %49 = vector.multi_reduction <maximumf>, %48, %cst_18 [2] : vector<32x1x1xf32> to vector<32x1xf32>
    %50 = vector.shape_cast %49 : vector<32x1xf32> to vector<32x1x1xf32>
    %51 = arith.subf %48, %50 : vector<32x1x1xf32>
    %52 = math.exp %51 : vector<32x1x1xf32>
    %cst_19 = arith.constant dense<0.000000e+00> : vector<32x1xf32>
    %53 = vector.multi_reduction <add>, %52, %cst_19 [2] : vector<32x1x1xf32> to vector<32x1xf32>
    %54 = vector.shape_cast %53 : vector<32x1xf32> to vector<32x1x1xf32>
    %55 = tpu.reciprocal %54 {approx = true} : vector<32x1x1xf32> -> vector<32x1x1xf32>
    "tpu.trace_start"() <{level = 10 : i32, message = "nqk,nke->nqe"}> : () -> ()
    %cst_20 = arith.constant dense<0.000000e+00> : vector<32x1x8xf32>
    %56 = tpu.matmul %52, %45, %cst_20 {dimension_numbers = #tpu.dot_dimension_numbers<[2], [1], [1], [2], [0, 0, 0, 1, 1, 2], [0], [0]>} : vector<32x1x1xf32>, vector<32x1x8xf32>, vector<32x1x8xf32> -> vector<32x1x8xf32>
    "tpu.trace_stop"() : () -> ()
    %57 = vector.broadcast %55 : vector<32x1x1xf32> to vector<32x1x8xf32>
    %58 = arith.mulf %56, %57 : vector<32x1x8xf32>
    %59 = arith.mulf %54, %55 : vector<32x1x1xf32>
    %60 = arith.addf %42, %59 : vector<32x1x1xf32>
    %61 = vector.extract_strided_slice %7 {offsets = [0, 0, 24], sizes = [32, 1, 8], strides = [1, 1, 1]} : vector<32x1x96xf32> to vector<32x1x8xf32>
    %62 = vector.extract_strided_slice %7 {offsets = [0, 0, 56], sizes = [32, 1, 8], strides = [1, 1, 1]} : vector<32x1x96xf32> to vector<32x1x8xf32>
    %63 = vector.extract_strided_slice %7 {offsets = [0, 0, 88], sizes = [32, 1, 8], strides = [1, 1, 1]} : vector<32x1x96xf32> to vector<32x1x8xf32>
    "tpu.trace_start"() <{level = 10 : i32, message = "nqe,nke->nqk"}> : () -> ()
    %cst_21 = arith.constant dense<0.000000e+00> : vector<32x1x1xf32>
    %64 = tpu.matmul %61, %62, %cst_21 {dimension_numbers = #tpu.dot_dimension_numbers<[2], [2], [1], [1], [0, 0, 0, 1, 1, 1], [0], [0]>} : vector<32x1x8xf32>, vector<32x1x8xf32>, vector<32x1x1xf32> -> vector<32x1x1xf32>
    "tpu.trace_stop"() : () -> ()
    %cst_22 = arith.constant 0.353553385 : f32
    %65 = vector.broadcast %cst_22 : f32 to vector<32x1x1xf32>
    %66 = arith.mulf %64, %65 : vector<32x1x1xf32>
    %cst_23 = arith.constant dense<0xFF800000> : vector<32x1xf32>
    %67 = vector.multi_reduction <maximumf>, %66, %cst_23 [2] : vector<32x1x1xf32> to vector<32x1xf32>
    %68 = vector.shape_cast %67 : vector<32x1xf32> to vector<32x1x1xf32>
    %69 = arith.subf %66, %68 : vector<32x1x1xf32>
    %70 = math.exp %69 : vector<32x1x1xf32>
    %cst_24 = arith.constant dense<0.000000e+00> : vector<32x1xf32>
    %71 = vector.multi_reduction <add>, %70, %cst_24 [2] : vector<32x1x1xf32> to vector<32x1xf32>
    %72 = vector.shape_cast %71 : vector<32x1xf32> to vector<32x1x1xf32>
    %73 = tpu.reciprocal %72 {approx = true} : vector<32x1x1xf32> -> vector<32x1x1xf32>
    "tpu.trace_start"() <{level = 10 : i32, message = "nqk,nke->nqe"}> : () -> ()
    %cst_25 = arith.constant dense<0.000000e+00> : vector<32x1x8xf32>
    %74 = tpu.matmul %70, %63, %cst_25 {dimension_numbers = #tpu.dot_dimension_numbers<[2], [1], [1], [2], [0, 0, 0, 1, 1, 2], [0], [0]>} : vector<32x1x1xf32>, vector<32x1x8xf32>, vector<32x1x8xf32> -> vector<32x1x8xf32>
    "tpu.trace_stop"() : () -> ()
    %75 = vector.broadcast %73 : vector<32x1x1xf32> to vector<32x1x8xf32>
    %76 = arith.mulf %74, %75 : vector<32x1x8xf32>
    %77 = arith.mulf %72, %73 : vector<32x1x1xf32>
    %78 = arith.addf %60, %77 : vector<32x1x1xf32>
    %79 = tpu.concatenate %23, %40, %58, %76 in 2 : vector<32x1x8xf32>, vector<32x1x8xf32>, vector<32x1x8xf32>, vector<32x1x8xf32> -> vector<32x1x32xf32>
    %80 = vector.shape_cast %79 : vector<32x1x32xf32> to vector<32x32xf32>
    %81 = arith.truncf %80 : vector<32x32xf32> to vector<32x32xbf16>
    %c0_26 = arith.constant 0 : index
    %c0_27 = arith.constant 0 : index
    %82 = vector.load %arg4[%c0_26, %c0_27] : memref<32x32xbf16, #tpu.memory_space<vmem>>, vector<32x32xbf16>
    %cst_28 = arith.constant dense<0.000000e+00> : vector<32x32xf32>
    %83 = tpu.matmul %81, %82, %cst_28 {dimension_numbers = #tpu.dot_dimension_numbers<[1], [0], [0], [1], [0, 0, 1, 1], [], []>} : vector<32x32xbf16>, vector<32x32xbf16>, vector<32x32xf32> -> vector<32x32xf32>
    %c0_29 = arith.constant 0 : index
    %c0_30 = arith.constant 0 : index
    %84 = vector.load %arg5[%c0_29, %c0_30] : memref<1x32xf32, #tpu.memory_space<vmem>>, vector<1x32xf32>
    %85 = vector.broadcast %84 : vector<1x32xf32> to vector<32x32xf32>
    %86 = arith.addf %83, %85 : vector<32x32xf32>
    %87 = arith.truncf %86 : vector<32x32xf32> to vector<32x32xbf16>
    %c0_31 = arith.constant 0 : index
    %c0_32 = arith.constant 0 : index
    %88 = vector.load %arg6[%c0_31, %c0_32] : memref<32x32xbf16, #tpu.memory_space<vmem>>, vector<32x32xbf16>
    tpu.vector_store %arg6[%c0_31, %c0_32], %87 {strides = array<i32>} : memref<32x32xbf16, #tpu.memory_space<vmem>>, vector<32x32xbf16>,
    %cst_33 = arith.constant 2.500000e-01 : f32
    %89 = vector.broadcast %cst_33 : f32 to vector<32x1x1xf32>
    %90 = arith.mulf %78, %89 : vector<32x1x1xf32>
    %c0_34 = arith.constant 0 : index
    %c0_35 = arith.constant 0 : index
    %c0_36 = arith.constant 0 : index
    %91 = vector.load %arg7[%c0_34, %c0_35, %c0_36] : memref<32x1x1xf32, #tpu.memory_space<vmem>>, vector<32x1x1xf32>
    tpu.vector_store %arg7[%c0_34, %c0_35, %c0_36], %90 {strides = array<i32>} : memref<32x1x1xf32, #tpu.memory_space<vmem>>, vector<32x1x1xf32>,
    return
  }
  func.func @transform_0(%arg0: i32) -> (i32, i32, i32) {
    %c0_i32 = arith.constant 0 : i32
    %c0_i32_0 = arith.constant 0 : i32
    %c0_i32_1 = arith.constant 0 : i32
    return %arg0, %c0_i32, %c0_i32_0 : i32, i32, i32
  }
  func.func @transform_1(%arg0: i32) -> (i32, i32) {
    %c0_i32 = arith.constant 0 : i32
    %c0_i32_0 = arith.constant 0 : i32
    %c0_i32_1 = arith.constant 0 : i32
    return %c0_i32, %c0_i32_0 : i32, i32
  }
  func.func @transform_2(%arg0: i32) -> (i32, i32) {
    %c0_i32 = arith.constant 0 : i32
    %c0_i32_0 = arith.constant 0 : i32
    %c0_i32_1 = arith.constant 0 : i32
    return %c0_i32, %c0_i32_0 : i32, i32
  }
  func.func @transform_3(%arg0: i32) -> (i32, i32) {
    %c0_i32 = arith.constant 0 : i32
    %c0_i32_0 = arith.constant 0 : i32
    %c0_i32_1 = arith.constant 0 : i32
    return %c0_i32, %c0_i32_0 : i32, i32
  }
  func.func @transform_4(%arg0: i32) -> (i32, i32) {
    %c0_i32 = arith.constant 0 : i32
    %c0_i32_0 = arith.constant 0 : i32
    %c0_i32_1 = arith.constant 0 : i32
    return %c0_i32, %c0_i32_0 : i32, i32
  }
  func.func @transform_5(%arg0: i32) -> (i32, i32) {
    %c0_i32 = arith.constant 0 : i32
    %c0_i32_0 = arith.constant 0 : i32
    return %arg0, %c0_i32 : i32, i32
  }
  func.func @transform_6(%arg0: i32) -> (i32, i32, i32) {
    %c0_i32 = arith.constant 0 : i32
    %c0_i32_0 = arith.constant 0 : i32
    %c0_i32_1 = arith.constant 0 : i32
    return %arg0, %c0_i32, %c0_i32_0 : i32, i32, i32
  }
}

module attributes {stable_mosaic.version = 11 : i64} {
  func.func @_combine_kernel(%arg0: i32, %arg1: i32, %arg2: memref<3x1x16x32xbf16, #tpu.memory_space<vmem>>, %arg3: memref<3x1x16x1xf32, #tpu.memory_space<vmem>>, %arg4: memref<1x16x32xf32, #tpu.memory_space<vmem>>) attributes {dimension_semantics = [#tpu.dimension_semantics<parallel>, #tpu.dimension_semantics<parallel>], iteration_bounds = array<i64: 2, 1>, scalar_prefetch = 0 : i64, scratch_operands = 0 : i64, tpu.core_type = #tpu.core_type<tc>, window_params = [{transform_indices = @transform_0, window_bounds = array<i64: 3, 1, 16, 32>}, {transform_indices = @transform_1, window_bounds = array<i64: 3, 1, 16, 1>}, {transform_indices = @transform_2, window_bounds = array<i64: 1, 16, 32>}]} {
    %c0 = arith.constant 0 : index
    %c0_0 = arith.constant 0 : index
    %c0_1 = arith.constant 0 : index
    %c0_2 = arith.constant 0 : index
    %0 = vector.load %arg2[%c0, %c0_0, %c0_1, %c0_2] : memref<3x1x16x32xbf16, #tpu.memory_space<vmem>>, vector<3x1x16x32xbf16>
    %1 = arith.extf %0 : vector<3x1x16x32xbf16> to vector<3x1x16x32xf32>
    %c0_3 = arith.constant 0 : index
    %c0_4 = arith.constant 0 : index
    %c0_5 = arith.constant 0 : index
    %c0_6 = arith.constant 0 : index
    %2 = vector.load %arg3[%c0_3, %c0_4, %c0_5, %c0_6] : memref<3x1x16x1xf32, #tpu.memory_space<vmem>>, vector<3x1x16x1xf32>
    %cst = arith.constant dense<0xFF800000> : vector<1x16x1xf32>
    %3 = vector.multi_reduction <maximumf>, %2, %cst [0] : vector<3x1x16x1xf32> to vector<1x16x1xf32>
    %4 = vector.shape_cast %3 : vector<1x16x1xf32> to vector<1x1x16x1xf32>
    %cst_7 = arith.constant 0.000000e+00 : f32
    %5 = vector.broadcast %cst_7 : f32 to vector<1x1x16x1xf32>
    %6 = arith.maximumf %4, %5 : vector<1x1x16x1xf32>
    %7 = vector.broadcast %6 : vector<1x1x16x1xf32> to vector<3x1x16x1xf32>
    %8 = arith.subf %2, %7 : vector<3x1x16x1xf32>
    %9 = math.exp %8 : vector<3x1x16x1xf32>
    %cst_8 = arith.constant dense<0.000000e+00> : vector<1x16x1xf32>
    %10 = vector.multi_reduction <add>, %9, %cst_8 [0] : vector<3x1x16x1xf32> to vector<1x16x1xf32>
    %11 = vector.shape_cast %10 : vector<1x16x1xf32> to vector<1x1x16x1xf32>
    %cst_9 = arith.constant 0.000000e+00 : f32
    %12 = vector.broadcast %cst_9 : f32 to vector<1x1x16x1xf32>
    %13 = arith.subf %12, %6 : vector<1x1x16x1xf32>
    %14 = math.exp %13 : vector<1x1x16x1xf32>
    %cst_10 = arith.constant 4.000000e+00 : f32
    %15 = vector.broadcast %cst_10 : f32 to vector<1x1x16x1xf32>
    %16 = arith.mulf %15, %14 : vector<1x1x16x1xf32>
    %17 = arith.addf %11, %16 : vector<1x1x16x1xf32>
    %18 = tpu.reciprocal %17 {approx = true} : vector<1x1x16x1xf32> -> vector<1x1x16x1xf32>
    %19 = vector.broadcast %18 : vector<1x1x16x1xf32> to vector<3x1x16x1xf32>
    %20 = arith.mulf %9, %19 : vector<3x1x16x1xf32>
    %21 = vector.broadcast %20 : vector<3x1x16x1xf32> to vector<3x1x16x32xf32>
    %22 = arith.mulf %21, %1 : vector<3x1x16x32xf32>
    %cst_11 = arith.constant dense<0.000000e+00> : vector<1x16x32xf32>
    %23 = vector.multi_reduction <add>, %22, %cst_11 [0] : vector<3x1x16x32xf32> to vector<1x16x32xf32>
    %c0_12 = arith.constant 0 : index
    %c0_13 = arith.constant 0 : index
    %c0_14 = arith.constant 0 : index
    %24 = vector.load %arg4[%c0_12, %c0_13, %c0_14] : memref<1x16x32xf32, #tpu.memory_space<vmem>>, vector<1x16x32xf32>
    tpu.vector_store %arg4[%c0_12, %c0_13, %c0_14], %23 {strides = array<i32>} : memref<1x16x32xf32, #tpu.memory_space<vmem>>, vector<1x16x32xf32>,
    return
  }
  func.func @transform_0(%arg0: i32, %arg1: i32) -> (i32, i32, i32, i32) {
    %c0_i32 = arith.constant 0 : i32
    %c0_i32_0 = arith.constant 0 : i32
    %c0_i32_1 = arith.constant 0 : i32
    return %c0_i32, %arg0, %arg1, %c0_i32_0 : i32, i32, i32, i32
  }
  func.func @transform_1(%arg0: i32, %arg1: i32) -> (i32, i32, i32, i32) {
    %c0_i32 = arith.constant 0 : i32
    %c0_i32_0 = arith.constant 0 : i32
    %c0_i32_1 = arith.constant 0 : i32
    return %c0_i32, %arg0, %arg1, %c0_i32_0 : i32, i32, i32, i32
  }
  func.func @transform_2(%arg0: i32, %arg1: i32) -> (i32, i32, i32) {
    %c0_i32 = arith.constant 0 : i32
    %c0_i32_0 = arith.constant 0 : i32
    return %arg0, %arg1, %c0_i32 : i32, i32, i32
  }
}

</mosaic_0001>

<llo_original>
// kernel: squeeze.3
$region0: #{squeeze.3}
  %s0 = inlined_call_operand.vmem [shape: f32[16,2,1], index: 0, kind: input, shape index: {}]
  %s1 = inlined_call_operand.vmem [shape: f32[2,4,2,2], index: 1, kind: output, shape index: {}]
  $region1: #{squeeze.3} parent=0
    #allocation0 [shape = 'u8[16384]{0}', space=vmem, size = 0x4000, scoped, tag = 'scoped mem for output reshape']
    #allocation1 [shape = 'u8[4096]{0}', space=vmem, size = 0x1000, scoped, tag = 'scoped mem for input reshape']
    %s3 = sshllo.u32 0, 2
    %v4 = vld [vmem:[%s0] sm:%s3]
    %5 = vst [vmem:[#allocation1] sm:%s3] %v4
    %v6 = vld [vmem:[#allocation1] sm:$0x3]
    %vm7 = vcmask 15360
    %8 = vst.msk [vmem:[#allocation0] ss:$16 sm:$0x3] %vm7, %v6
    %v9 = vld [vmem:[#allocation1] sm:$0x3]
    %10 = vrot.lane.b32.xlu0 %v9, 126
    %v11 = vpop.permute.xlu0 %10
    %vm12 = vcmask 15360
    %s13 = scalar_lea.vmem [#allocation0], 1
    %14 = vst.msk [vmem:[%s13] ss:$16 sm:$0x3] %vm12, %v11
    %v15 = vld [vmem:[#allocation1] sm:$0x3]
    %16 = vrot.lane.b32.xlu0 %v15, 124
    %v17 = vpop.permute.xlu0 %16
    %vm18 = vcmask 15360
    %s19 = scalar_lea.vmem [#allocation0], 2
    %20 = vst.msk [vmem:[%s19] ss:$16 sm:$0x3] %vm18, %v17
    %v21 = vld [vmem:[#allocation1] sm:$0x3]
    %22 = vrot.lane.b32.xlu0 %v21, 122
    %v23 = vpop.permute.xlu0 %22
    %vm24 = vcmask 15360
    %s25 = scalar_lea.vmem [#allocation0], 3
    %26 = vst.msk [vmem:[%s25] ss:$16 sm:$0x3] %vm24, %v23
    %v27 = vld [vmem:[#allocation1] sm:$0x3]
    %28 = vrot.lane.b32.xlu0 %v27, 120
    %v29 = vpop.permute.xlu0 %28
    %vm30 = vcmask 15360
    %s31 = scalar_lea.vmem [#allocation0], 8
    %32 = vst.msk [vmem:[%s31] ss:$16 sm:$0x3] %vm30, %v29
    %v33 = vld [vmem:[#allocation1] sm:$0x3]
    %34 = vrot.lane.b32.xlu0 %v33, 118
    %v35 = vpop.permute.xlu0 %34
    %vm36 = vcmask 15360
    %s37 = scalar_lea.vmem [#allocation0], 9
    %38 = vst.msk [vmem:[%s37] ss:$16 sm:$0x3] %vm36, %v35
    %v39 = vld [vmem:[#allocation1] sm:$0x3]
    %40 = vrot.lane.b32.xlu0 %v39, 116
    %v41 = vpop.permute.xlu0 %40
    %vm42 = vcmask 15360
    %s43 = scalar_lea.vmem [#allocation0], 10
    %44 = vst.msk [vmem:[%s43] ss:$16 sm:$0x3] %vm42, %v41
    %v45 = vld [vmem:[#allocation1] sm:$0x3]
    %46 = vrot.lane.b32.xlu0 %v45, 114
    %v47 = vpop.permute.xlu0 %46
    %vm48 = vcmask 15360
    %s49 = scalar_lea.vmem [#allocation0], 11
    %50 = vst.msk [vmem:[%s49] ss:$16 sm:$0x3] %vm48, %v47
    %s52 = sshllo.u32 0, 4
    %v54 = vld [vmem:[#allocation0] sm:%s52]
    %s55 = sshllo.u32 0, 4
    %56 = vst [vmem:[%s1] sm:%s55] %v54
    %s57 = scalar_lea.vmem [#allocation0], 8
    %v58 = vld [vmem:[%s57] sm:%s52]
    %s59 = sshllo.u32 0, 4
    %s60 = scalar_lea.vmem %s1, 4
    %61 = vst [vmem:[%s60] sm:%s59] %v58
    %s62 = scalar_lea.vmem [#allocation0], 16
    %v63 = vld [vmem:[%s62] sm:%s52]
    %s64 = sshllo.u32 0, 4
    %s65 = smul.addr 4, 2
    %s66 = scalar_lea.vmem %s1, %s65
    %67 = vst [vmem:[%s66] sm:%s64] %v63
    %s68 = scalar_lea.vmem [#allocation0], 24
    %v69 = vld [vmem:[%s68] sm:%s52]
    %s70 = sshllo.u32 0, 4
    %s71 = smul.addr 4, 3
    %s72 = scalar_lea.vmem %s1, %s71
    %73 = vst [vmem:[%s72] sm:%s70] %v69

// kernel: squeeze.4
$region0: #{squeeze.4}
  %s0 = inlined_call_operand.vmem [shape: f32[8,4,1], index: 0, kind: input, shape index: {}]
  %s1 = inlined_call_operand.vmem [shape: f32[2,1,4,4], index: 1, kind: output, shape index: {}]
  $region1: #{squeeze.4} parent=0
    #allocation0 [shape = 'u8[16384]{0}', space=vmem, size = 0x4000, scoped, tag = 'scoped mem for output reshape']
    #allocation1 [shape = 'u8[4096]{0}', space=vmem, size = 0x1000, scoped, tag = 'scoped mem for input reshape']
    %s3 = sshllo.u32 0, 4
    %v4 = vld [vmem:[%s0] sm:%s3]
    %5 = vst [vmem:[#allocation1] sm:%s3] %v4
    %v6 = vld [vmem:[#allocation1] sm:$0xf]
    %vm7 = vcmask 31744
    %8 = vst.msk [vmem:[#allocation0] ss:$8 sm:$0xf] %vm7, %v6
    %v9 = vld [vmem:[#allocation1] sm:$0xf]
    %10 = vrot.lane.b32.xlu0 %v9, 124
    %v11 = vpop.permute.xlu0 %10
    %vm12 = vcmask 31744
    %s13 = scalar_lea.vmem [#allocation0], 1
    %14 = vst.msk [vmem:[%s13] ss:$8 sm:$0xf] %vm12, %v11
    %s16 = sshllo.u32 0, 2
    %v18 = vld [vmem:[#allocation0] sm:%s16]
    %s19 = sshllo.u32 0, 2
    %20 = vst [vmem:[%s1] sm:%s19] %v18
    %s21 = scalar_lea.vmem [#allocation0], 8
    %v22 = vld [vmem:[%s21] sm:%s16]
    %s23 = sshllo.u32 0, 2
    %s24 = scalar_lea.vmem %s1, 2
    %25 = vst [vmem:[%s24] sm:%s23] %v22
    %s26 = scalar_lea.vmem [#allocation0], 16
    %v27 = vld [vmem:[%s26] sm:%s16]
    %s28 = sshllo.u32 0, 2
    %s29 = smul.addr 2, 2
    %s30 = scalar_lea.vmem %s1, %s29
    %31 = vst [vmem:[%s30] sm:%s28] %v27
    %s32 = scalar_lea.vmem [#allocation0], 24
    %v33 = vld [vmem:[%s32] sm:%s16]
    %s34 = sshllo.u32 0, 2
    %s35 = smul.addr 2, 3
    %s36 = scalar_lea.vmem %s1, %s35
    %37 = vst [vmem:[%s36] sm:%s34] %v33

// kernel: squeeze.5
$region0: #{squeeze.5}
  %s0 = inlined_call_operand.vmem [shape: f32[32], index: 0, kind: input, shape index: {}]
  %s1 = inlined_call_operand.vmem [shape: f32[1,2,16], index: 1, kind: output, shape index: {}]
  $region1: #{squeeze.5} parent=0
    #allocation0 [shape = 'u8[4096]{0}', space=vmem, size = 0x1000, scoped, tag = 'scoped mem for output reshape']
    #allocation1 [shape = 'u8[4096]{0}', space=vmem, size = 0x1000, scoped, tag = 'scoped mem for input reshape']
    %s3 = sshllo.u32 0, 1
    %v4 = vld [vmem:[%s0] sm:%s3]
    %5 = vst [vmem:[#allocation1] sm:%s3] %v4
    %v6 = vld [vmem:[#allocation1] sm:$0x1]
    %vm7 = vcmask 130048
    %8 = vst.msk [vmem:[#allocation0] sm:$0x1] %vm7, %v6
    %v9 = vld [vmem:[#allocation1] sm:$0x1]
    %10 = vrot.lane.b32.xlu0 %v9, 112
    %v11 = vpop.permute.xlu0 %10
    %vm12 = vcmask 130048
    %s13 = scalar_lea.vmem [#allocation0], 1
    %14 = vst.msk [vmem:[%s13] sm:$0x1] %vm12, %v11
    %s16 = sshllo.u32 0, 2
    %v18 = vld [vmem:[#allocation0] sm:%s16]
    %s19 = sshllo.u32 0, 2
    %20 = vst [vmem:[%s1] sm:%s19] %v18

</llo_original>
